<compile_context>
chip_gen: v5e
topology: v5e:2x2
jax: 0.10.0
libtpu: 0.0.40
codegen_flags: <defaults>
</compile_context>

<pallas_src>
import functools

import jax
import jax.numpy as jnp
from jax import lax
from jax.experimental import pallas as pl
from jax.experimental.pallas import tpu as pltpu


def _round_up(a, b):
    return ((a + b - 1) // b) * b


def _vmem_budget_bytes():
    """Generation-aware VMEM budget (~60% of per-core capacity).

    v5e/v6e: 128 MiB -> ~76 MiB; v7x: 64 MiB -> ~38 MiB. Falls back to a
    conservative 64 MiB capacity if the trace-time query is unavailable.
    """
    cap = 64 * 1024 * 1024
    try:
        info = pltpu.get_tpu_info()
        cap = int(info.vmem_capacity_bytes)
    except Exception:
        pass
    return int(cap * 0.6)


def _pick_tiles(np_, dp, in_bytes, out_bytes, budget):
    """Largest 128-aligned (t, tk) with t | Np and tk | Dp whose working set
    (double-buffered input/output tiles + f32 accumulator + f32 epilogue
    temporaries) fits the VMEM budget."""
    t_cands = [t for t in (1024, 896, 768, 640, 512, 384, 256, 128)
               if t <= np_ and np_ % t == 0] or [128]
    k_cands = [k for k in (2048, 1024, 512, 256, 128)
               if k <= dp and dp % k == 0] or [128]
    for t in t_cands:
        for tk in k_cands:
            need = (2 * (t * tk + t * tk) * in_bytes   # row + col x tiles (dbl-buffered)
                    + 2 * t * t * out_bytes            # output tile (dbl-buffered)
                    + 3 * t * t * 4                    # f32 accumulator + f32 epilogue temps
                    + 4 * t * 4)                       # norm side inputs
            if need <= budget:
                return t, tk
    return 128, 128


def _gaussian_kernel_body(xi_ref, xj_ref, si_ref, sj_ref, o_ref, acc_ref, *, coef):
    # xi_ref: (tm, tk) row tile ; xj_ref: (tn, tk) col tile
    # si_ref: (tm, 1) = -||x_i||^2/(2 sigma^2) ; sj_ref: (1, tn) likewise
    # acc_ref: (tm, tn) f32 accumulator over the feature (k) axis
    k = pl.program_id(2)

    @pl.when(k == 0)
    def _():
        acc_ref[...] = jnp.zeros_like(acc_ref)

    # Contract last dim of both tiles -> no transpose materialized; f32 acc.
    acc_ref[...] += lax.dot_general(
        xi_ref[...], xj_ref[...],
        dimension_numbers=(((1,), (1,)), ((), ())),
        preferred_element_type=jnp.float32,
    )

    @pl.when(k == pl.num_programs(2) - 1)
    def _():
        # exponent = -(||xi||^2 + ||xj||^2 - 2<xi,xj>) / (2 sigma^2)
        #          = s_i + s_j + coef * <xi,xj>
        t = si_ref[...] + sj_ref[...] + coef * acc_ref[...]
        t = jnp.minimum(t, 0.0)          # fp-cancellation guard (diag ~ 1)
        o_ref[...] = jnp.exp(t).astype(o_ref.dtype)


def gaussian_kernel(x, sigma, out_dtype=None, tile_m=None, tile_n=None,
                    tile_k=None):
    """Pallas TPU implementation of GaussianKernel.forward for x of shape [N, D]."""
    assert sigma > 0
    N, D = x.shape
    out_dtype = x.dtype if out_dtype is None else jnp.dtype(out_dtype)
    in_bytes = jnp.dtype(x.dtype).itemsize
    out_bytes = jnp.dtype(out_dtype).itemsize

    # Pad both dims only up to a multiple of 128 (lane/sublane friendly).
    # Zero padding does not change inner products or norms of valid rows, and
    # padded output rows/cols are sliced away below.
    Np = _round_up(max(N, 1), 128)
    Dp = _round_up(max(D, 1), 128)

    budget = _vmem_budget_bytes()
    t_def, tk_def = _pick_tiles(Np, Dp, in_bytes, out_bytes, budget)
    tm = t_def if tile_m is None else tile_m
    tn = t_def if tile_n is None else tile_n
    tk = tk_def if tile_k is None else tile_k

    if (Np, Dp) != (N, D):
        x_p = jnp.zeros((Np, Dp), dtype=x.dtype).at[:N, :D].set(x)
    else:
        x_p = x

    inv_two_sigma_sq = 1.0 / (2.0 * float(sigma) ** 2)
    coef = 2.0 * inv_two_sigma_sq

    # Squared norms once (f32), with the scale folded in.
    xf = x_p.astype(jnp.float32)
    s = (-inv_two_sigma_sq) * jnp.sum(xf * xf, axis=1)
    s_col = s[:, None]               # (Np, 1)
    s_row = s[None, :]               # (1, Np)

    kernel = functools.partial(_gaussian_kernel_body, coef=coef)

    gi, gj, gk = Np // tm, Np // tn, Dp // tk

    cost = pl.CostEstimate(
        flops=2 * Np * Np * Dp,
        transcendentals=Np * Np,
        bytes_accessed=(gj * Np * Dp * in_bytes      # row tiles, re-read per j
                        + gi * Np * Dp * in_bytes    # col tiles, re-read per i
                        + Np * Np * out_bytes),      # output writeback
    )

    out = pl.pallas_call(
        kernel,
        out_shape=jax.ShapeDtypeStruct((Np, Np), out_dtype),
        grid_spec=pltpu.PrefetchScalarGridSpec(
            num_scalar_prefetch=0,
            grid=(gi, gj, gk),
            in_specs=[
                pl.BlockSpec((tm, tk), lambda i, j, k: (i, k)),   # row tile of x
                pl.BlockSpec((tn, tk), lambda i, j, k: (j, k)),   # col tile of x
                pl.BlockSpec((tm, 1), lambda i, j, k: (i, 0)),    # scaled row norms
                pl.BlockSpec((1, tn), lambda i, j, k: (0, j)),    # scaled col norms
            ],
            out_specs=pl.BlockSpec((tm, tn), lambda i, j, k: (i, j)),
            scratch_shapes=[pltpu.VMEM((tm, tn), jnp.float32)],
        ),
        compiler_params=pltpu.CompilerParams(
            dimension_semantics=("parallel", "parallel", "arbitrary"),
            vmem_limit_bytes=budget,
        ),
        cost_estimate=cost,
    )(x_p, x_p, s_col, s_row)

    # TODO(synk): optional symmetry exploitation (compute only i<=j block pairs
    # and mirror) would ~halve MXU/EUP/HBM work for very large N.
    return out[:N, :N]


def gaussian_kernel_ref(x, sigma):
    """Pure-JAX reference mirroring the PyTorch module exactly."""
    x = x.astype(jnp.float32)
    inner = x @ x.T
    norm = jnp.diag(inner)
    dist_sq = norm[None, :] + norm[:, None] - 2.0 * inner
    return jnp.exp(-dist_sq / (2.0 * sigma ** 2))


if __name__ == "__main__":
    # GaussianKernel has no learned parameters; sigma is a fixed hyperparameter.
    sigma = 1.5

    key = jax.random.PRNGKey(0)
    N, D = 8, 32                      # small shapes: 8 samples, 32 features
    x = jax.random.normal(key, (N, D), dtype=jnp.float32)

    out = gaussian_kernel(x, sigma)
    out = jax.block_until_ready(out)

    ref = gaussian_kernel_ref(x, sigma)
    assert out.shape == (N, N)
    assert jnp.allclose(out, ref, atol=1e-5, rtol=1e-5), "mismatch vs reference"

    print("KERNEL_OK")
</pallas_src>

<mosaic_0001>
module attributes {stable_mosaic.version = 11 : i64} {
  func.func @_gaussian_kernel_body(%arg0: i32, %arg1: i32, %arg2: i32, %arg3: memref<128x128xf32, #tpu.memory_space<vmem>>, %arg4: memref<128x128xf32, #tpu.memory_space<vmem>>, %arg5: memref<128x1xf32, #tpu.memory_space<vmem>>, %arg6: memref<1x128xf32, #tpu.memory_space<vmem>>, %arg7: memref<128x128xf32, #tpu.memory_space<vmem>>, %arg8: memref<128x128xf32, #tpu.memory_space<vmem>>) attributes {dimension_semantics = [#tpu.dimension_semantics<parallel>, #tpu.dimension_semantics<parallel>, #tpu.dimension_semantics<arbitrary>], iteration_bounds = array<i64: 1, 1, 1>, scalar_prefetch = 0 : i64, scratch_operands = 1 : i64, tpu.core_type = #tpu.core_type<tc>, window_params = [{transform_indices = @transform_0, window_bounds = array<i64: 128, 128>}, {transform_indices = @transform_1, window_bounds = array<i64: 128, 128>}, {transform_indices = @transform_2, window_bounds = array<i64: 128, 1>}, {transform_indices = @transform_3, window_bounds = array<i64: 1, 128>}, {transform_indices = @transform_4, window_bounds = array<i64: 128, 128>}]} {
    %c0_i32 = arith.constant 0 : i32
    %0 = arith.cmpi eq, %arg2, %c0_i32 : i32
    %1 = arith.extui %0 : i1 to i32
    %c0_i32_0 = arith.constant 0 : i32
    %2 = arith.cmpi ne, %1, %c0_i32_0 : i32
    scf.if %2 {
      %cst_10 = arith.constant 0.000000e+00 : f32
      %12 = vector.broadcast %cst_10 : f32 to vector<128x128xf32>
      %c0_11 = arith.constant 0 : index
      %c0_12 = arith.constant 0 : index
      %13 = vector.load %arg8[%c0_11, %c0_12] : memref<128x128xf32, #tpu.memory_space<vmem>>, vector<128x128xf32>
      tpu.vector_store %arg8[%c0_11, %c0_12], %12 {strides = array<i32>} : memref<128x128xf32, #tpu.memory_space<vmem>>, vector<128x128xf32>,
    } else {
    }
    %c0 = arith.constant 0 : index
    %c0_1 = arith.constant 0 : index
    %3 = vector.load %arg8[%c0, %c0_1] : memref<128x128xf32, #tpu.memory_space<vmem>>, vector<128x128xf32>
    %c0_2 = arith.constant 0 : index
    %c0_3 = arith.constant 0 : index
    %4 = vector.load %arg3[%c0_2, %c0_3] : memref<128x128xf32, #tpu.memory_space<vmem>>, vector<128x128xf32>
    %c0_4 = arith.constant 0 : index
    %c0_5 = arith.constant 0 : index
    %5 = vector.load %arg4[%c0_4, %c0_5] : memref<128x128xf32, #tpu.memory_space<vmem>>, vector<128x128xf32>
    %cst = arith.constant dense<0.000000e+00> : vector<128x128xf32>
    %6 = tpu.matmul %4, %5, %cst {dimension_numbers = #tpu.dot_dimension_numbers<[1], [1], [0], [0], [0, 0, 1, 0], [], []>} : vector<128x128xf32>, vector<128x128xf32>, vector<128x128xf32> -> vector<128x128xf32>
    %7 = arith.addf %3, %6 : vector<128x128xf32>
    %c0_6 = arith.constant 0 : index
    %c0_7 = arith.constant 0 : index
    %8 = vector.load %arg8[%c0_6, %c0_7] : memref<128x128xf32, #tpu.memory_space<vmem>>, vector<128x128xf32>
    tpu.vector_store %arg8[%c0_6, %c0_7], %7 {strides = array<i32>} : memref<128x128xf32, #tpu.memory_space<vmem>>, vector<128x128xf32>,
    %c0_i32_8 = arith.constant 0 : i32
    %9 = arith.cmpi eq, %arg2, %c0_i32_8 : i32
    %10 = arith.extui %9 : i1 to i32
    %c0_i32_9 = arith.constant 0 : i32
    %11 = arith.cmpi ne, %10, %c0_i32_9 : i32
    scf.if %11 {
      %c0_10 = arith.constant 0 : index
      %c0_11 = arith.constant 0 : index
      %12 = vector.load %arg5[%c0_10, %c0_11] : memref<128x1xf32, #tpu.memory_space<vmem>>, vector<128x1xf32>
      %c0_12 = arith.constant 0 : index
      %c0_13 = arith.constant 0 : index
      %13 = vector.load %arg6[%c0_12, %c0_13] : memref<1x128xf32, #tpu.memory_space<vmem>>, vector<1x128xf32>
      %14 = vector.broadcast %12 : vector<128x1xf32> to vector<128x128xf32>
      %15 = vector.broadcast %13 : vector<1x128xf32> to vector<128x128xf32>
      %16 = arith.addf %14, %15 : vector<128x128xf32>
      %c0_14 = arith.constant 0 : index
      %c0_15 = arith.constant 0 : index
      %17 = vector.load %arg8[%c0_14, %c0_15] : memref<128x128xf32, #tpu.memory_space<vmem>>, vector<128x128xf32>
      %cst_16 = arith.constant 0.444444448 : f32
      %18 = vector.broadcast %cst_16 : f32 to vector<128x128xf32>
      %19 = arith.mulf %18, %17 : vector<128x128xf32>
      %20 = arith.addf %16, %19 : vector<128x128xf32>
      %cst_17 = arith.constant 0.000000e+00 : f32
      %21 = vector.broadcast %cst_17 : f32 to vector<128x128xf32>
      %22 = arith.minimumf %20, %21 : vector<128x128xf32>
      %23 = math.exp %22 : vector<128x128xf32>
      %c0_18 = arith.constant 0 : index
      %c0_19 = arith.constant 0 : index
      %24 = vector.load %arg7[%c0_18, %c0_19] : memref<128x128xf32, #tpu.memory_space<vmem>>, vector<128x128xf32>
      tpu.vector_store %arg7[%c0_18, %c0_19], %23 {strides = array<i32>} : memref<128x128xf32, #tpu.memory_space<vmem>>, vector<128x128xf32>,
    } else {
    }
    return
  }
  func.func @transform_0(%arg0: i32, %arg1: i32, %arg2: i32) -> (i32, i32) {
    %c0_i32 = arith.constant 0 : i32
    return %arg0, %arg2 : i32, i32
  }
  func.func @transform_1(%arg0: i32, %arg1: i32, %arg2: i32) -> (i32, i32) {
    %c0_i32 = arith.constant 0 : i32
    return %arg1, %arg2 : i32, i32
  }
  func.func @transform_2(%arg0: i32, %arg1: i32, %arg2: i32) -> (i32, i32) {
    %c0_i32 = arith.constant 0 : i32
    %c0_i32_0 = arith.constant 0 : i32
    return %arg0, %c0_i32 : i32, i32
  }
  func.func @transform_3(%arg0: i32, %arg1: i32, %arg2: i32) -> (i32, i32) {
    %c0_i32 = arith.constant 0 : i32
    %c0_i32_0 = arith.constant 0 : i32
    return %c0_i32, %arg1 : i32, i32
  }
  func.func @transform_4(%arg0: i32, %arg1: i32, %arg2: i32) -> (i32, i32) {
    %c0_i32 = arith.constant 0 : i32
    return %arg0, %arg1 : i32, i32
  }
}

</mosaic_0001>

<llo_original>
// kernel: tpu_custom_call.1
$region0: #{tpu_custom_call.1}
  #allocation0 [shape = 'u32[]', space=smem, size = 0x4, offset = 0x4, fixed_abs, tag = 'smem constant byte address 0x4 - core index']
  #allocation1 [shape = 'u32[72,128]{1,0:T(1,128)}', space=vmem, size = 0x9000, scoped, tag = 'internal scratch']
  #allocation2 [shape = 'f32[128,128]{1,0:T(8,128)}', space=vmem, size = 0x10000, scoped, tag = 'scratch operand']
  %s0 = inlined_call_operand.vmem [shape: f32[128,128], index: 0, kind: input, shape index: {}]
  %s1 = inlined_call_operand.hbm [shape: f32[128,128], index: 1, kind: input, shape index: {}]
  %s2 = inlined_call_operand.vmem [shape: f32[128,1], index: 2, kind: input, shape index: {}]
  %s3 = inlined_call_operand.vmem [shape: f32[1,128], index: 3, kind: input, shape index: {}]
  %s4 = inlined_call_operand.hbm [shape: f32[128,128], index: 4, kind: output, shape index: {}]
  %s5 = sld [smem:[#allocation0]]
  $region38: #{tpu_custom_call.1} parent=0
    _
  %s7 = ssub.s32 1, %s5
  %s8 = scalar_select 0, %s7, %s5
  $region1: #{tpu_custom_call.1} parent=0
    #allocation3 [shape = 'u8[65536]{0}', space=vmem, size = 0x10000, scoped, tag = 'input window, operand 1, single buffered']
    #allocation4 [shape = 's32[1]{0}', space=sflag, size = 0x4, scoped, tag = 'scoped memory for tpu_custom_call.1']
    #allocation5 [shape = 's32[1]{0}', space=sflag, size = 0x4, scoped, tag = 'scoped memory for tpu_custom_call.1']
    #allocation6 [shape = 'u8[65536]{0}', space=vmem, size = 0x10000, scoped, tag = 'output window, operand 0, single buffered']
    %9 = vsyncpa [#allocation4], 0
    %10 = vsyncpa [#allocation5], 0
    // Predicated region
    $region2: #{tpu_custom_call.1} parent=1 // pred_check
      _
    $region3: #{tpu_custom_call.1} parent=1 // pred_check_branch
      %12 = sbr.rel (0) target = $region5
    $region4: #{tpu_custom_call.1} parent=1 // pred_region
      _
    $region5: #{tpu_custom_call.1} parent=1 // pred_fallthru
      _
    // Predicated region
    $region6: #{tpu_custom_call.1} parent=1 // pred_check
      _
    $region7: #{tpu_custom_call.1} parent=1 // pred_check_branch
      %14 = sbr.rel (0) target = $region9
    $region8: #{tpu_custom_call.1} parent=1 // pred_region
      %16 = vsyncadd [#allocation4], 0
      %s17 = sshll.u32 %s1, 4
      %s18 = int_to_ptr.hbm [resolvable:$true] %s17
      %s19 = sshll.u32 [#allocation3], 4
      %s20 = int_to_ptr.vmem [resolvable:$true] %s19
      %25 = dma.hbm_to_vmem [thread:$0]  %s18, 2048, %s20, [#allocation4], 128, 128, 8
    $region9: #{tpu_custom_call.1} parent=1 // pred_fallthru
      _
    // Predicated region
    $region10: #{tpu_custom_call.1} parent=1 // pred_check
      _
    $region11: #{tpu_custom_call.1} parent=1 // pred_check_branch
      %27 = sbr.rel (0) target = $region13
    $region12: #{tpu_custom_call.1} parent=1 // pred_region
      _
    $region13: #{tpu_custom_call.1} parent=1 // pred_fallthru
      _
    // Predicated region
    $region14: #{tpu_custom_call.1} parent=1 // pred_check
      _
    $region15: #{tpu_custom_call.1} parent=1 // pred_check_branch
      %29 = sbr.rel (0) target = $region17
    $region16: #{tpu_custom_call.1} parent=1 // pred_region
      _
    $region17: #{tpu_custom_call.1} parent=1 // pred_fallthru
      _
    // Predicated region
    $region18: #{tpu_custom_call.1} parent=1 // pred_check
      _
    $region19: #{tpu_custom_call.1} parent=1 // pred_check_branch
      %31 = sbr.rel (0) target = $region21
    $region20: #{tpu_custom_call.1} parent=1 // pred_region
      %33 = dma.done [#allocation4], 2048
    $region21: #{tpu_custom_call.1} parent=1 // pred_fallthru
      _
    %p34 = scmp.eq.s32.totalorder 0, 0
    // Predicated region
    $region22: #{tpu_custom_call.1} parent=1 // pred_check
      %p35 = pneg %p34
    $region23: #{tpu_custom_call.1} parent=1 // pred_check_branch
      %37 = sbr.rel (%p35) target = $region25
    $region24: #{tpu_custom_call.1} parent=1 // pred_region
      %38 = vst [vmem:[#allocation2] sm:$0xff] 0.0
      %39 = vst [vmem:[#allocation2 + $0x8] sm:$0xff] 0.0
      %40 = vst [vmem:[#allocation2 + $0x10] sm:$0xff] 0.0
      %41 = vst [vmem:[#allocation2 + $0x18] sm:$0xff] 0.0
      %42 = vst [vmem:[#allocation2 + $0x20] sm:$0xff] 0.0
      %43 = vst [vmem:[#allocation2 + $0x28] sm:$0xff] 0.0
      %44 = vst [vmem:[#allocation2 + $0x30] sm:$0xff] 0.0
      %45 = vst [vmem:[#allocation2 + $0x38] sm:$0xff] 0.0
      %46 = vst [vmem:[#allocation2 + $0x40] sm:$0xff] 0.0
      %47 = vst [vmem:[#allocation2 + $0x48] sm:$0xff] 0.0
      %48 = vst [vmem:[#allocation2 + $0x50] sm:$0xff] 0.0
      %49 = vst [vmem:[#allocation2 + $0x58] sm:$0xff] 0.0
      %50 = vst [vmem:[#allocation2 + $0x60] sm:$0xff] 0.0
      %51 = vst [vmem:[#allocation2 + $0x68] sm:$0xff] 0.0
      %52 = vst [vmem:[#allocation2 + $0x70] sm:$0xff] 0.0
      %53 = vst [vmem:[#allocation2 + $0x78] sm:$0xff] 0.0
    $region25: #{tpu_custom_call.1} parent=1 // pred_fallthru
      _
    %v54 = vld [vmem:[#allocation2] sm:$0xff]
    %v55 = vld [vmem:[#allocation2 + $0x8] sm:$0xff]
    %v56 = vld [vmem:[#allocation2 + $0x10] sm:$0xff]
    %v57 = vld [vmem:[#allocation2 + $0x18] sm:$0xff]
    %v58 = vld [vmem:[#allocation2 + $0x20] sm:$0xff]
    %v59 = vld [vmem:[#allocation2 + $0x28] sm:$0xff]
    %v60 = vld [vmem:[#allocation2 + $0x30] sm:$0xff]
    %v61 = vld [vmem:[#allocation2 + $0x38] sm:$0xff]
    %v62 = vld [vmem:[#allocation2 + $0x40] sm:$0xff]
    %v63 = vld [vmem:[#allocation2 + $0x48] sm:$0xff]
    %v64 = vld [vmem:[#allocation2 + $0x50] sm:$0xff]
    %v65 = vld [vmem:[#allocation2 + $0x58] sm:$0xff]
    %v66 = vld [vmem:[#allocation2 + $0x60] sm:$0xff]
    %v67 = vld [vmem:[#allocation2 + $0x68] sm:$0xff]
    %v68 = vld [vmem:[#allocation2 + $0x70] sm:$0xff]
    %v69 = vld [vmem:[#allocation2 + $0x78] sm:$0xff]
    %v70 = vld [vmem:[%s0] sm:$0xff]
    %v71 = vld [vmem:[%s0 + $0x8] sm:$0xff]
    %v72 = vld [vmem:[%s0 + $0x10] sm:$0xff]
    %v73 = vld [vmem:[%s0 + $0x18] sm:$0xff]
    %v74 = vld [vmem:[%s0 + $0x20] sm:$0xff]
    %v75 = vld [vmem:[%s0 + $0x28] sm:$0xff]
    %v76 = vld [vmem:[%s0 + $0x30] sm:$0xff]
    %v77 = vld [vmem:[%s0 + $0x38] sm:$0xff]
    %v78 = vld [vmem:[%s0 + $0x40] sm:$0xff]
    %v79 = vld [vmem:[%s0 + $0x48] sm:$0xff]
    %v80 = vld [vmem:[%s0 + $0x50] sm:$0xff]
    %v81 = vld [vmem:[%s0 + $0x58] sm:$0xff]
    %v82 = vld [vmem:[%s0 + $0x60] sm:$0xff]
    %v83 = vld [vmem:[%s0 + $0x68] sm:$0xff]
    %v84 = vld [vmem:[%s0 + $0x70] sm:$0xff]
    %v85 = vld [vmem:[%s0 + $0x78] sm:$0xff]
    %v86 = vld [vmem:[#allocation3] sm:$0xff]
    %v87 = vld [vmem:[#allocation3 + $0x8] sm:$0xff]
    %v88 = vld [vmem:[#allocation3 + $0x10] sm:$0xff]
    %v89 = vld [vmem:[#allocation3 + $0x18] sm:$0xff]
    %v90 = vld [vmem:[#allocation3 + $0x20] sm:$0xff]
    %v91 = vld [vmem:[#allocation3 + $0x28] sm:$0xff]
    %v92 = vld [vmem:[#allocation3 + $0x30] sm:$0xff]
    %v93 = vld [vmem:[#allocation3 + $0x38] sm:$0xff]
    %v94 = vld [vmem:[#allocation3 + $0x40] sm:$0xff]
    %v95 = vld [vmem:[#allocation3 + $0x48] sm:$0xff]
    %v96 = vld [vmem:[#allocation3 + $0x50] sm:$0xff]
    %v97 = vld [vmem:[#allocation3 + $0x58] sm:$0xff]
    %v98 = vld [vmem:[#allocation3 + $0x60] sm:$0xff]
    %v99 = vld [vmem:[#allocation3 + $0x68] sm:$0xff]
    %v100 = vld [vmem:[#allocation3 + $0x70] sm:$0xff]
    %v101 = vld [vmem:[#allocation3 + $0x78] sm:$0xff]
    %102 = vmatpush.xpose.msra.mxu0 %v101
    %103 = vmatpush.xpose.msra.mxu0 %v100
    %104 = vmatpush.xpose.msra.mxu0 %v99
    %105 = vmatpush.xpose.msra.mxu0 %v98
    %106 = vmatpush.xpose.msra.mxu0 %v97
    %107 = vmatpush.xpose.msra.mxu0 %v96
    %108 = vmatpush.xpose.msra.mxu0 %v95
    %109 = vmatpush.xpose.msra.mxu0 %v94
    %110 = vmatpush.xpose.msra.mxu0 %v93
    %111 = vmatpush.xpose.msra.mxu0 %v92
    %112 = vmatpush.xpose.msra.mxu0 %v91
    %113 = vmatpush.xpose.msra.mxu0 %v90
    %114 = vmatpush.xpose.msra.mxu0 %v89
    %115 = vmatpush.xpose.msra.mxu0 %v88
    %116 = vmatpush.xpose.msra.mxu0 %v87
    %117 = vmatpush.xpose.msra.mxu0 %v86
    %118 = vmatmul.f32.gmra.mxu0 %v70
    %v119 = vpop.f32.mrf.mxu0
    %v120 = vadd.f32 0.0, %v119
    %121 = vmatmul.f32.gmra.mxu0 %v71
    %v122 = vpop.f32.mrf.mxu0
    %v123 = vadd.f32 0.0, %v122
    %124 = vmatmul.f32.gmra.mxu0 %v72
    %v125 = vpop.f32.mrf.mxu0
    %v126 = vadd.f32 0.0, %v125
    %127 = vmatmul.f32.gmra.mxu0 %v73
    %v128 = vpop.f32.mrf.mxu0
    %v129 = vadd.f32 0.0, %v128
    %130 = vmatmul.f32.gmra.mxu0 %v74
    %v131 = vpop.f32.mrf.mxu0
    %v132 = vadd.f32 0.0, %v131
    %133 = vmatmul.f32.gmra.mxu0 %v75
    %v134 = vpop.f32.mrf.mxu0
    %v135 = vadd.f32 0.0, %v134
    %136 = vmatmul.f32.gmra.mxu0 %v76
    %v137 = vpop.f32.mrf.mxu0
    %v138 = vadd.f32 0.0, %v137
    %139 = vmatmul.f32.gmra.mxu0 %v77
    %v140 = vpop.f32.mrf.mxu0
    %v141 = vadd.f32 0.0, %v140
    %142 = vmatmul.f32.gmra.mxu0 %v78
    %v143 = vpop.f32.mrf.mxu0
    %v144 = vadd.f32 0.0, %v143
    %145 = vmatmul.f32.gmra.mxu0 %v79
    %v146 = vpop.f32.mrf.mxu0
    %v147 = vadd.f32 0.0, %v146
    %148 = vmatmul.f32.gmra.mxu0 %v80
    %v149 = vpop.f32.mrf.mxu0
    %v150 = vadd.f32 0.0, %v149
    %151 = vmatmul.f32.gmra.mxu0 %v81
    %v152 = vpop.f32.mrf.mxu0
    %v153 = vadd.f32 0.0, %v152
    %154 = vmatmul.f32.gmra.mxu0 %v82
    %v155 = vpop.f32.mrf.mxu0
    %v156 = vadd.f32 0.0, %v155
    %157 = vmatmul.f32.gmra.mxu0 %v83
    %v158 = vpop.f32.mrf.mxu0
    %v159 = vadd.f32 0.0, %v158
    %160 = vmatmul.f32.gmra.mxu0 %v84
    %v161 = vpop.f32.mrf.mxu0
    %v162 = vadd.f32 0.0, %v161
    %163 = vmatmul.f32.gmra.mxu0 %v85
    %v164 = vpop.f32.mrf.mxu0
    %v165 = vadd.f32 0.0, %v164
    %166 = vdwg.mxu0
    %v167 = vadd.f32 %v54, %v120
    %v168 = vadd.f32 %v55, %v123
    %v169 = vadd.f32 %v56, %v126
    %v170 = vadd.f32 %v57, %v129
    %v171 = vadd.f32 %v58, %v132
    %v172 = vadd.f32 %v59, %v135
    %v173 = vadd.f32 %v60, %v138
    %v174 = vadd.f32 %v61, %v141
    %v175 = vadd.f32 %v62, %v144
    %v176 = vadd.f32 %v63, %v147
    %v177 = vadd.f32 %v64, %v150
    %v178 = vadd.f32 %v65, %v153
    %v179 = vadd.f32 %v66, %v156
    %v180 = vadd.f32 %v67, %v159
    %v181 = vadd.f32 %v68, %v162
    %v182 = vadd.f32 %v69, %v165
    %183 = vst [vmem:[#allocation2] sm:$0xff] %v167
    %184 = vst [vmem:[#allocation2 + $0x8] sm:$0xff] %v168
    %185 = vst [vmem:[#allocation2 + $0x10] sm:$0xff] %v169
    %186 = vst [vmem:[#allocation2 + $0x18] sm:$0xff] %v170
    %187 = vst [vmem:[#allocation2 + $0x20] sm:$0xff] %v171
    %188 = vst [vmem:[#allocation2 + $0x28] sm:$0xff] %v172
    %189 = vst [vmem:[#allocation2 + $0x30] sm:$0xff] %v173
    %190 = vst [vmem:[#allocation2 + $0x38] sm:$0xff] %v174
    %191 = vst [vmem:[#allocation2 + $0x40] sm:$0xff] %v175
    %192 = vst [vmem:[#allocation2 + $0x48] sm:$0xff] %v176
    %193 = vst [vmem:[#allocation2 + $0x50] sm:$0xff] %v177
    %194 = vst [vmem:[#allocation2 + $0x58] sm:$0xff] %v178
    %195 = vst [vmem:[#allocation2 + $0x60] sm:$0xff] %v179
    %196 = vst [vmem:[#allocation2 + $0x68] sm:$0xff] %v180
    %197 = vst [vmem:[#allocation2 + $0x70] sm:$0xff] %v181
    %198 = vst [vmem:[#allocation2 + $0x78] sm:$0xff] %v182
    // Predicated region
    $region26: #{tpu_custom_call.1} parent=1 // pred_check
      %p199 = pneg %p34
    $region27: #{tpu_custom_call.1} parent=1 // pred_check_branch
      %201 = sbr.rel (%p199) target = $region29
    $region28: #{tpu_custom_call.1} parent=1 // pred_region
      %v202 = vld [vmem:[%s2] sm:$0xff]
      %v203 = vld [vmem:[%s2 + $0x8] sm:$0xff]
      %v204 = vld [vmem:[%s2 + $0x10] sm:$0xff]
      %v205 = vld [vmem:[%s2 + $0x18] sm:$0xff]
      %v206 = vld [vmem:[%s2 + $0x20] sm:$0xff]
      %v207 = vld [vmem:[%s2 + $0x28] sm:$0xff]
      %v208 = vld [vmem:[%s2 + $0x30] sm:$0xff]
      %v209 = vld [vmem:[%s2 + $0x38] sm:$0xff]
      %v210 = vld [vmem:[%s2 + $0x40] sm:$0xff]
      %v211 = vld [vmem:[%s2 + $0x48] sm:$0xff]
      %v212 = vld [vmem:[%s2 + $0x50] sm:$0xff]
      %v213 = vld [vmem:[%s2 + $0x58] sm:$0xff]
      %v214 = vld [vmem:[%s2 + $0x60] sm:$0xff]
      %v215 = vld [vmem:[%s2 + $0x68] sm:$0xff]
      %v216 = vld [vmem:[%s2 + $0x70] sm:$0xff]
      %v217 = vld [vmem:[%s2 + $0x78] sm:$0xff]
      %v218 = vld [vmem:[%s3] sm:$0x1]
      %220 = vset.pattern.permute.xlu0 0
      %221 = vperm.xlu0 %220, %v202
      %v222 = vpop.permute.xlu0 %221
      %225 = vset.pattern.permute.xlu0 0
      %226 = vperm.xlu0 %225, %v203
      %v227 = vpop.permute.xlu0 %226
      %230 = vset.pattern.permute.xlu0 0
      %231 = vperm.xlu0 %230, %v204
      %v232 = vpop.permute.xlu0 %231
      %235 = vset.pattern.permute.xlu0 0
      %236 = vperm.xlu0 %235, %v205
      %v237 = vpop.permute.xlu0 %236
      %240 = vset.pattern.permute.xlu0 0
      %241 = vperm.xlu0 %240, %v206
      %v242 = vpop.permute.xlu0 %241
      %245 = vset.pattern.permute.xlu0 0
      %246 = vperm.xlu0 %245, %v207
      %v247 = vpop.permute.xlu0 %246
      %250 = vset.pattern.permute.xlu0 0
      %251 = vperm.xlu0 %250, %v208
      %v252 = vpop.permute.xlu0 %251
      %255 = vset.pattern.permute.xlu0 0
      %256 = vperm.xlu0 %255, %v209
      %v257 = vpop.permute.xlu0 %256
      %260 = vset.pattern.permute.xlu0 0
      %261 = vperm.xlu0 %260, %v210
      %v262 = vpop.permute.xlu0 %261
      %265 = vset.pattern.permute.xlu0 0
      %266 = vperm.xlu0 %265, %v211
      %v267 = vpop.permute.xlu0 %266
      %270 = vset.pattern.permute.xlu0 0
      %271 = vperm.xlu0 %270, %v212
      %v272 = vpop.permute.xlu0 %271
      %275 = vset.pattern.permute.xlu0 0
      %276 = vperm.xlu0 %275, %v213
      %v277 = vpop.permute.xlu0 %276
      %280 = vset.pattern.permute.xlu0 0
      %281 = vperm.xlu0 %280, %v214
      %v282 = vpop.permute.xlu0 %281
      %285 = vset.pattern.permute.xlu0 0
      %286 = vperm.xlu0 %285, %v215
      %v287 = vpop.permute.xlu0 %286
      %290 = vset.pattern.permute.xlu0 0
      %291 = vperm.xlu0 %290, %v216
      %v292 = vpop.permute.xlu0 %291
      %295 = vset.pattern.permute.xlu0 0
      %296 = vperm.xlu0 %295, %v217
      %v297 = vpop.permute.xlu0 %296
      %v300 = vperm.slane %v218, 0
      %v302 = vadd.f32 %v222, %v300
      %v303 = vadd.f32 %v227, %v300
      %v304 = vadd.f32 %v232, %v300
      %v305 = vadd.f32 %v237, %v300
      %v306 = vadd.f32 %v242, %v300
      %v307 = vadd.f32 %v247, %v300
      %v308 = vadd.f32 %v252, %v300
      %v309 = vadd.f32 %v257, %v300
      %v310 = vadd.f32 %v262, %v300
      %v311 = vadd.f32 %v267, %v300
      %v312 = vadd.f32 %v272, %v300
      %v313 = vadd.f32 %v277, %v300
      %v314 = vadd.f32 %v282, %v300
      %v315 = vadd.f32 %v287, %v300
      %v316 = vadd.f32 %v292, %v300
      %v317 = vadd.f32 %v297, %v300
      %v318 = vld [vmem:[#allocation2] sm:$0xff]
      %v319 = vld [vmem:[#allocation2 + $0x8] sm:$0xff]
      %v320 = vld [vmem:[#allocation2 + $0x10] sm:$0xff]
      %v321 = vld [vmem:[#allocation2 + $0x18] sm:$0xff]
      %v322 = vld [vmem:[#allocation2 + $0x20] sm:$0xff]
      %v323 = vld [vmem:[#allocation2 + $0x28] sm:$0xff]
      %v324 = vld [vmem:[#allocation2 + $0x30] sm:$0xff]
      %v325 = vld [vmem:[#allocation2 + $0x38] sm:$0xff]
      %v326 = vld [vmem:[#allocation2 + $0x40] sm:$0xff]
      %v327 = vld [vmem:[#allocation2 + $0x48] sm:$0xff]
      %v328 = vld [vmem:[#allocation2 + $0x50] sm:$0xff]
      %v329 = vld [vmem:[#allocation2 + $0x58] sm:$0xff]
      %v330 = vld [vmem:[#allocation2 + $0x60] sm:$0xff]
      %v331 = vld [vmem:[#allocation2 + $0x68] sm:$0xff]
      %v332 = vld [vmem:[#allocation2 + $0x70] sm:$0xff]
      %v333 = vld [vmem:[#allocation2 + $0x78] sm:$0xff]
      %v334 = vmul.f32 %v318, 0.44444445
      %v335 = vmul.f32 %v319, 0.44444445
      %v336 = vmul.f32 %v320, 0.44444445
      %v337 = vmul.f32 %v321, 0.44444445
      %v338 = vmul.f32 %v322, 0.44444445
      %v339 = vmul.f32 %v323, 0.44444445
      %v340 = vmul.f32 %v324, 0.44444445
      %v341 = vmul.f32 %v325, 0.44444445
      %v342 = vmul.f32 %v326, 0.44444445
      %v343 = vmul.f32 %v327, 0.44444445
      %v344 = vmul.f32 %v328, 0.44444445
      %v345 = vmul.f32 %v329, 0.44444445
      %v346 = vmul.f32 %v330, 0.44444445
      %v347 = vmul.f32 %v331, 0.44444445
      %v348 = vmul.f32 %v332, 0.44444445
      %v349 = vmul.f32 %v333, 0.44444445
      %v350 = vadd.f32 %v302, %v334
      %v351 = vadd.f32 %v303, %v335
      %v352 = vadd.f32 %v304, %v336
      %v353 = vadd.f32 %v305, %v337
      %v354 = vadd.f32 %v306, %v338
      %v355 = vadd.f32 %v307, %v339
      %v356 = vadd.f32 %v308, %v340
      %v357 = vadd.f32 %v309, %v341
      %v358 = vadd.f32 %v310, %v342
      %v359 = vadd.f32 %v311, %v343
      %v360 = vadd.f32 %v312, %v344
      %v361 = vadd.f32 %v313, %v345
      %v362 = vadd.f32 %v314, %v346
      %v363 = vadd.f32 %v315, %v347
      %v364 = vadd.f32 %v316, %v348
      %v365 = vadd.f32 %v317, %v349
      %v366 = vmin.f32 %v350, 0.0
      %v367 = vmin.f32 %v351, 0.0
      %v368 = vmin.f32 %v352, 0.0
      %v369 = vmin.f32 %v353, 0.0
      %v370 = vmin.f32 %v354, 0.0
      %v371 = vmin.f32 %v355, 0.0
      %v372 = vmin.f32 %v356, 0.0
      %v373 = vmin.f32 %v357, 0.0
      %v374 = vmin.f32 %v358, 0.0
      %v375 = vmin.f32 %v359, 0.0
      %v376 = vmin.f32 %v360, 0.0
      %v377 = vmin.f32 %v361, 0.0
      %v378 = vmin.f32 %v362, 0.0
      %v379 = vmin.f32 %v363, 0.0
      %v380 = vmin.f32 %v364, 0.0
      %v381 = vmin.f32 %v365, 0.0
      %v382 = vmul.f32 %v366, 1.442695
      %v383 = vpow.pop %v382
      %v384 = vmul.f32 %v367, 1.442695
      %v385 = vpow.pop %v384
      %v386 = vmul.f32 %v368, 1.442695
      %v387 = vpow.pop %v386
      %v388 = vmul.f32 %v369, 1.442695
      %v389 = vpow.pop %v388
      %v390 = vmul.f32 %v370, 1.442695
      %v391 = vpow.pop %v390
      %v392 = vmul.f32 %v371, 1.442695
      %v393 = vpow.pop %v392
      %v394 = vmul.f32 %v372, 1.442695
      %v395 = vpow.pop %v394
      %v396 = vmul.f32 %v373, 1.442695
      %v397 = vpow.pop %v396
      %v398 = vmul.f32 %v374, 1.442695
      %v399 = vpow.pop %v398
      %v400 = vmul.f32 %v375, 1.442695
      %v401 = vpow.pop %v400
      %v402 = vmul.f32 %v376, 1.442695
      %v403 = vpow.pop %v402
      %v404 = vmul.f32 %v377, 1.442695
      %v405 = vpow.pop %v404
      %v406 = vmul.f32 %v378, 1.442695
      %v407 = vpow.pop %v406
      %v408 = vmul.f32 %v379, 1.442695
      %v409 = vpow.pop %v408
      %v410 = vmul.f32 %v380, 1.442695
      %v411 = vpow.pop %v410
      %v412 = vmul.f32 %v381, 1.442695
      %v413 = vpow.pop %v412
      %414 = vst [vmem:[#allocation6] sm:$0xff] %v383
      %415 = vst [vmem:[#allocation6 + $0x8] sm:$0xff] %v385
      %416 = vst [vmem:[#allocation6 + $0x10] sm:$0xff] %v387
      %417 = vst [vmem:[#allocation6 + $0x18] sm:$0xff] %v389
      %418 = vst [vmem:[#allocation6 + $0x20] sm:$0xff] %v391
      %419 = vst [vmem:[#allocation6 + $0x28] sm:$0xff] %v393
      %420 = vst [vmem:[#allocation6 + $0x30] sm:$0xff] %v395
      %421 = vst [vmem:[#allocation6 + $0x38] sm:$0xff] %v397
      %422 = vst [vmem:[#allocation6 + $0x40] sm:$0xff] %v399
      %423 = vst [vmem:[#allocation6 + $0x48] sm:$0xff] %v401
      %424 = vst [vmem:[#allocation6 + $0x50] sm:$0xff] %v403
      %425 = vst [vmem:[#allocation6 + $0x58] sm:$0xff] %v405
      %426 = vst [vmem:[#allocation6 + $0x60] sm:$0xff] %v407
      %427 = vst [vmem:[#allocation6 + $0x68] sm:$0xff] %v409
      %428 = vst [vmem:[#allocation6 + $0x70] sm:$0xff] %v411
      %429 = vst [vmem:[#allocation6 + $0x78] sm:$0xff] %v413
    $region29: #{tpu_custom_call.1} parent=1 // pred_fallthru
      _
    // Predicated region
    $region30: #{tpu_custom_call.1} parent=1 // pred_check
      _
    $region31: #{tpu_custom_call.1} parent=1 // pred_check_branch
      %431 = sbr.rel (0) target = $region33
    $region32: #{tpu_custom_call.1} parent=1 // pred_region
      %433 = vsyncadd [#allocation5], 0
      %s434 = sshll.u32 [#allocation6], 4
      %s435 = int_to_ptr.vmem [resolvable:$true] %s434
      %s436 = sshll.u32 %s4, 4
      %s437 = int_to_ptr.hbm [resolvable:$true] %s436
      %442 = dma.vmem_to_hbm [thread:$0]  %s435, 2048, %s437, [#allocation5], 128, 128, 8
    $region33: #{tpu_custom_call.1} parent=1 // pred_fallthru
      _
    // Predicated region
    $region34: #{tpu_custom_call.1} parent=1 // pred_check
      _
    $region35: #{tpu_custom_call.1} parent=1 // pred_check_branch
      %444 = sbr.rel (0) target = $region37
    $region36: #{tpu_custom_call.1} parent=1 // pred_region
      %446 = dma.done [#allocation5], 2048
    $region37: #{tpu_custom_call.1} parent=1 // pred_fallthru
      _
    %447 = vsyncpa [#allocation4], 1
    %448 = vsyncpa [#allocation5], 1

</llo_original>
